<compile_context>
chip_gen: v7x
topology: tpu7x:2x2x1
jax: 0.10.0
libtpu: 0.0.40
codegen_flags: <defaults>
</compile_context>

<pallas_src>
import functools

import jax
import jax.numpy as jnp
from jax.experimental import pallas as pl
from jax.experimental.pallas import tpu as pltpu


def _round_up(x, m):
    return ((x + m - 1) // m) * m


def _resident_spec(shape):
    """Constant-index, single-buffered (weights stay VMEM-resident)."""
    idx = lambda i: (0, 0)
    try:
        return pl.BlockSpec(shape, idx, pipeline_mode=pl.Buffered(1))
    except Exception:  # older jax without pipeline_mode / Buffered(1)
        return pl.BlockSpec(shape, idx)


def _stream_spec(shape, buffers):
    idx = lambda i: (i, 0)
    if buffers == 2:
        return pl.BlockSpec(shape, idx)
    try:
        return pl.BlockSpec(shape, idx, pipeline_mode=pl.Buffered(buffers))
    except Exception:
        return pl.BlockSpec(shape, idx)


def _dense_encoder_kernel(n_hidden, hid_pads, latent_pad, matmul_dtype, *refs):
    # refs layout:
    #   x, w_0..w_{n_hidden-1}, b_hidden_packed, w_head, b_head, eps, out
    x_ref = refs[0]
    w_refs = refs[1:1 + n_hidden]
    b_hid_ref = refs[1 + n_hidden]
    w_head_ref = refs[2 + n_hidden]
    b_head_ref = refs[3 + n_hidden]
    eps_ref = refs[4 + n_hidden]
    out_ref = refs[5 + n_hidden]

    h = x_ref[...]  # (block_b, D_in), already matmul_dtype (streamed pre-cast)

    # Hidden Linear + ReLU stack: MXU matmul (f32 accumulation), f32 elementwise.
    for i in range(n_hidden):
        w = w_refs[i][...]                        # (in_pad_i, hid_pad_i)
        b = b_hid_ref[i:i + 1, 0:hid_pads[i]]     # (1, hid_pad_i) f32, lane-aligned
        acc = jnp.dot(h.astype(matmul_dtype), w,
                      preferred_element_type=jnp.float32)
        h = jnp.maximum(acc + b, 0.0)             # f32 on VPU

    # Fused z_mean / z_log_var head: one matmul against [Wm_pad | Wv_pad].
    heads = jnp.dot(h.astype(matmul_dtype), w_head_ref[...],
                    preferred_element_type=jnp.float32) + b_head_ref[...]
    z_mean = heads[:, 0:latent_pad]                     # 128-aligned slice
    z_log_var = heads[:, latent_pad:2 * latent_pad]     # 128-aligned slice

    # Reparameterization (Sampling): z = mu + exp(0.5*logvar) * eps.
    z = z_mean + jnp.exp(0.5 * z_log_var) * eps_ref[...]

    # Lane-aligned slice stores into the packed output slab (no concatenate).
    out_ref[:, 0:2 * latent_pad] = heads
    out_ref[:, 2 * latent_pad:3 * latent_pad] = z


def dense_encoder_forward(x, params, eps, *, block_b=512,
                          matmul_dtype=jnp.float32, stream_buffers=2):
    """x: (B, seq_len, feat_dim). params: dict of weights. eps: (B, latent_dim).

    Returns (z_mean, z_log_var, z), each (B, latent_dim) float32.
    """
    B = x.shape[0]
    # nn.Flatten(); streamed in matmul_dtype (bf16 halves the dominant stream).
    x_flat = x.reshape(B, -1).astype(matmul_dtype)
    D_in = x_flat.shape[1]

    hidden = params["hidden"]                          # [(W(in,out), b(1,out)), ...]
    wm, bm = params["z_mean"]
    wv, bv = params["z_log_var"]
    latent_dim = wm.shape[1]
    n_hidden = len(hidden)
    hid_sizes = tuple(int(w.shape[1]) for w, _ in hidden)
    hid_pads = tuple(_round_up(s, 128) for s in hid_sizes)
    latent_pad = _round_up(latent_dim, 128)

    # ---- batch tiling: tile multiple of 8 sublanes; >=2 tiles when possible ----
    b8 = _round_up(B, 8)
    block_b = max(8, (min(block_b, b8) // 8) * 8)
    if (b8 // block_b) < 2 and b8 >= 16:          # ensure 2-TC megacore split (v7x)
        block_b = max(8, _round_up(pl.cdiv(b8, 2), 8))
    B_pad = _round_up(B, block_b)
    if B_pad != B:
        x_flat = jnp.pad(x_flat, ((0, B_pad - B), (0, 0)))
    eps_p = jnp.zeros((B_pad, latent_pad), jnp.float32)
    eps_p = eps_p.at[:B, :latent_dim].set(eps.astype(jnp.float32))
    grid = (B_pad // block_b,)

    # ---- zero-padded resident weights (128-multiple widths), packed biases ----
    w_list = []
    for i, (w, _) in enumerate(hidden):
        in_pad = D_in if i == 0 else hid_pads[i - 1]
        wp = jnp.zeros((in_pad, hid_pads[i]), jnp.float32)
        wp = wp.at[:w.shape[0], :w.shape[1]].set(w.astype(jnp.float32))
        w_list.append(wp.astype(matmul_dtype))
    max_hid_pad = max(hid_pads)
    b_hidden = jnp.zeros((n_hidden, max_hid_pad), jnp.float32)
    for i, (_, b) in enumerate(hidden):
        b_hidden = b_hidden.at[i, :hid_sizes[i]].set(
            b.reshape(-1).astype(jnp.float32))

    head_in = hid_pads[-1] if n_hidden > 0 else D_in
    w_head = jnp.zeros((head_in, 2 * latent_pad), jnp.float32)
    w_head = w_head.at[:wm.shape[0], 0:latent_dim].set(wm.astype(jnp.float32))
    w_head = w_head.at[:wv.shape[0],
                       latent_pad:latent_pad + latent_dim].set(wv.astype(jnp.float32))
    w_head = w_head.astype(matmul_dtype)
    b_head = jnp.zeros((1, 2 * latent_pad), jnp.float32)
    b_head = b_head.at[0, 0:latent_dim].set(bm.reshape(-1).astype(jnp.float32))
    b_head = b_head.at[0, latent_pad:latent_pad + latent_dim].set(
        bv.reshape(-1).astype(jnp.float32))

    # ---- lane-dense packed output slab: [z_mean_pad | z_log_var_pad | z_pad] ----
    out_w = 3 * latent_pad

    # ---- BlockSpecs ----
    in_specs = [_stream_spec((block_b, D_in), stream_buffers)]
    in_specs += [_resident_spec(w.shape) for w in w_list]
    in_specs += [_resident_spec(b_hidden.shape),
                 _resident_spec(w_head.shape),
                 _resident_spec(b_head.shape)]
    in_specs += [_stream_spec((block_b, latent_pad), 2)]
    out_spec = _stream_spec((block_b, out_w), stream_buffers)

    # ---- generation-aware VMEM budget ----
    def nbytes(a):
        return a.size * a.dtype.itemsize

    resident_bytes = (sum(nbytes(w) for w in w_list) + nbytes(b_hidden)
                      + nbytes(w_head) + nbytes(b_head))
    x_tile = block_b * D_in * x_flat.dtype.itemsize
    eps_tile = block_b * latent_pad * 4
    out_tile = block_b * out_w * 4
    stream_bytes = stream_buffers * (x_tile + out_tile) + 2 * eps_tile
    act_bytes = 4 * block_b * 3 * max(hid_pads + (2 * latent_pad, D_in))
    vmem_need = resident_bytes + stream_bytes + act_bytes + (4 << 20)
    try:
        vmem_cap = int(getattr(pltpu.get_tpu_info(), "vmem_capacity_bytes",
                               64 << 20))
    except Exception:
        vmem_cap = 64 << 20
    vmem_limit = int(min(max(vmem_need, 32 << 20), int(0.85 * vmem_cap)))

    # ---- cost estimate (padded dims; x bytes at streamed dtype) ----
    flops = 0
    d = D_in
    for m in hid_pads:
        flops += 2 * B_pad * d * m
        d = m
    flops += 2 * B_pad * d * (2 * latent_pad)
    cost = pl.CostEstimate(
        flops=flops,
        transcendentals=B_pad * latent_pad,
        bytes_accessed=(nbytes(x_flat) + nbytes(eps_p) + resident_bytes
                        + 4 * B_pad * out_w))

    kernel = functools.partial(
        _dense_encoder_kernel, n_hidden, hid_pads, latent_pad, matmul_dtype)

    packed = pl.pallas_call(
        kernel,
        out_shape=jax.ShapeDtypeStruct((B_pad, out_w), jnp.float32),
        grid=grid,
        in_specs=in_specs,
        out_specs=out_spec,
        compiler_params=pltpu.CompilerParams(
            dimension_semantics=("parallel",),
            vmem_limit_bytes=vmem_limit),
        cost_estimate=cost,
    )(x_flat, *w_list, b_hidden, w_head, b_head, eps_p)

    z_mean = packed[:B, 0:latent_dim]
    z_log_var = packed[:B, latent_pad:latent_pad + latent_dim]
    z = packed[:B, 2 * latent_pad:2 * latent_pad + latent_dim]
    return z_mean, z_log_var, z


def init_params(key, seq_len, feat_dim, hidden_layer_sizes, latent_dim):
    """Deterministic synthetic init (shapes match nn.Linear; values arbitrary)."""
    params = {"hidden": []}
    input_size = seq_len * feat_dim
    for m_out in hidden_layer_sizes:
        key, kw, kb = jax.random.split(key, 3)
        bound = 1.0 / jnp.sqrt(input_size)
        w = jax.random.uniform(kw, (input_size, m_out), jnp.float32, -bound, bound)
        b = jax.random.uniform(kb, (1, m_out), jnp.float32, -bound, bound)
        params["hidden"].append((w, b))
        input_size = m_out
    for name in ("z_mean", "z_log_var"):
        key, kw, kb = jax.random.split(key, 3)
        bound = 1.0 / jnp.sqrt(input_size)
        w = jax.random.uniform(kw, (input_size, latent_dim), jnp.float32, -bound, bound)
        b = jax.random.uniform(kb, (1, latent_dim), jnp.float32, -bound, bound)
        params[name] = (w, b)
    return params


if __name__ == "__main__":
    B, SEQ_LEN, FEAT_DIM = 2, 8, 4
    HIDDEN_LAYER_SIZES = (32, 16)
    LATENT_DIM = 8

    root = jax.random.PRNGKey(0)
    k_x, k_eps, k_params, k_x2, k_eps2 = jax.random.split(root, 5)

    x = jax.random.normal(k_x, (B, SEQ_LEN, FEAT_DIM), jnp.float32)
    eps = jax.random.normal(k_eps, (B, LATENT_DIM), jnp.float32)
    params = init_params(k_params, SEQ_LEN, FEAT_DIM, HIDDEN_LAYER_SIZES, LATENT_DIM)

    def reference(x_in, prm, eps_in):
        h = x_in.reshape(x_in.shape[0], -1)
        for w, b in prm["hidden"]:
            h = jnp.maximum(h @ w + b, 0.0)
        zm = h @ prm["z_mean"][0] + prm["z_mean"][1]
        zv = h @ prm["z_log_var"][0] + prm["z_log_var"][1]
        return zm, zv, zm + jnp.exp(0.5 * zv) * eps_in

    # 1) f32 MXU path at the toy shape (single batch tile).
    z_mean, z_log_var, z = dense_encoder_forward(x, params, eps)
    jax.block_until_ready((z_mean, z_log_var, z))
    zm_ref, zv_ref, z_ref = reference(x, params, eps)
    assert jnp.allclose(z_mean, zm_ref, atol=2e-5)
    assert jnp.allclose(z_log_var, zv_ref, atol=2e-5)
    assert jnp.allclose(z, z_ref, atol=2e-5)

    # 2) Multi-tile grid with batch padding (B not a multiple of the tile).
    B2 = 300
    x2 = jax.random.normal(k_x2, (B2, SEQ_LEN, FEAT_DIM), jnp.float32)
    eps2 = jax.random.normal(k_eps2, (B2, LATENT_DIM), jnp.float32)
    z_mean2, z_log_var2, z2 = dense_encoder_forward(x2, params, eps2, block_b=128)
    jax.block_until_ready((z_mean2, z_log_var2, z2))
    zm2_ref, zv2_ref, z2_ref = reference(x2, params, eps2)
    assert jnp.allclose(z_mean2, zm2_ref, atol=2e-5)
    assert jnp.allclose(z_log_var2, zv2_ref, atol=2e-5)
    assert jnp.allclose(z2, z2_ref, atol=2e-5)

    # 3) bf16 streamed x + bf16 weights (fast MXU path), f32 accum + elementwise.
    z_mean3, z_log_var3, z3 = dense_encoder_forward(
        x2, params, eps2, block_b=128, matmul_dtype=jnp.bfloat16)
    jax.block_until_ready((z_mean3, z_log_var3, z3))
    assert jnp.allclose(z_mean3, zm2_ref, atol=1e-1, rtol=1e-1)
    assert jnp.allclose(z_log_var3, zv2_ref, atol=1e-1, rtol=1e-1)
    assert jnp.allclose(z3, z2_ref, atol=1e-1, rtol=1e-1)

    # 4) Default large-tile path (block_b auto-split for >=2 grid tiles).
    z_mean4, z_log_var4, z4 = dense_encoder_forward(x2, params, eps2)
    jax.block_until_ready((z_mean4, z_log_var4, z4))
    assert jnp.allclose(z4, z2_ref, atol=2e-5)

    print("KERNEL_OK")
</pallas_src>

<mosaic_0001>
module attributes {stable_mosaic.version = 11 : i64} {
  func.func @_dense_encoder_kernel(%arg0: i32, %arg1: memref<8x32xf32, #tpu.memory_space<vmem>>, %arg2: memref<32x128xf32, #tpu.memory_space<vmem>>, %arg3: memref<128x128xf32, #tpu.memory_space<vmem>>, %arg4: memref<2x128xf32, #tpu.memory_space<vmem>>, %arg5: memref<128x256xf32, #tpu.memory_space<vmem>>, %arg6: memref<1x256xf32, #tpu.memory_space<vmem>>, %arg7: memref<8x128xf32, #tpu.memory_space<vmem>>, %arg8: memref<8x384xf32, #tpu.memory_space<vmem>>) attributes {dimension_semantics = [#tpu.dimension_semantics<parallel>], iteration_bounds = array<i64: 1>, scalar_prefetch = 0 : i64, scratch_operands = 0 : i64, tpu.core_type = #tpu.core_type<tc>, window_params = [{transform_indices = @transform_0, window_bounds = array<i64: 8, 32>}, {pipeline_mode = #tpu.pipeline_mode<synchronous>, transform_indices = @transform_1, window_bounds = array<i64: 32, 128>}, {pipeline_mode = #tpu.pipeline_mode<synchronous>, transform_indices = @transform_2, window_bounds = array<i64: 128, 128>}, {pipeline_mode = #tpu.pipeline_mode<synchronous>, transform_indices = @transform_3, window_bounds = array<i64: 2, 128>}, {pipeline_mode = #tpu.pipeline_mode<synchronous>, transform_indices = @transform_4, window_bounds = array<i64: 128, 256>}, {pipeline_mode = #tpu.pipeline_mode<synchronous>, transform_indices = @transform_5, window_bounds = array<i64: 1, 256>}, {transform_indices = @transform_6, window_bounds = array<i64: 8, 128>}, {transform_indices = @transform_7, window_bounds = array<i64: 8, 384>}]} {
    %c0 = arith.constant 0 : index
    %c0_0 = arith.constant 0 : index
    %0 = vector.load %arg1[%c0, %c0_0] : memref<8x32xf32, #tpu.memory_space<vmem>>, vector<8x32xf32>
    %c0_1 = arith.constant 0 : index
    %c0_2 = arith.constant 0 : index
    %1 = vector.load %arg2[%c0_1, %c0_2] : memref<32x128xf32, #tpu.memory_space<vmem>>, vector<32x128xf32>
    %c0_3 = arith.constant 0 : index
    %c0_4 = arith.constant 0 : index
    %2 = vector.load %arg4[%c0_3, %c0_4] : memref<2x128xf32, #tpu.memory_space<vmem>>, vector<1x128xf32>
    %cst = arith.constant dense<0.000000e+00> : vector<8x128xf32>
    %3 = tpu.matmul %0, %1, %cst {dimension_numbers = #tpu.dot_dimension_numbers<[1], [0], [0], [1], [0, 0, 1, 1], [], []>} : vector<8x32xf32>, vector<32x128xf32>, vector<8x128xf32> -> vector<8x128xf32>
    %4 = vector.broadcast %2 : vector<1x128xf32> to vector<8x128xf32>
    %5 = arith.addf %3, %4 : vector<8x128xf32>
    %cst_5 = arith.constant 0.000000e+00 : f32
    %6 = vector.broadcast %cst_5 : f32 to vector<8x128xf32>
    %7 = arith.maximumf %5, %6 : vector<8x128xf32>
    %c0_6 = arith.constant 0 : index
    %c0_7 = arith.constant 0 : index
    %8 = vector.load %arg3[%c0_6, %c0_7] : memref<128x128xf32, #tpu.memory_space<vmem>>, vector<128x128xf32>
    %c1 = arith.constant 1 : index
    %c0_8 = arith.constant 0 : index
    %9 = vector.load %arg4[%c1, %c0_8] : memref<2x128xf32, #tpu.memory_space<vmem>>, vector<1x128xf32>
    %cst_9 = arith.constant dense<0.000000e+00> : vector<8x128xf32>
    %10 = tpu.matmul %7, %8, %cst_9 {dimension_numbers = #tpu.dot_dimension_numbers<[1], [0], [0], [1], [0, 0, 1, 1], [], []>} : vector<8x128xf32>, vector<128x128xf32>, vector<8x128xf32> -> vector<8x128xf32>
    %11 = vector.broadcast %9 : vector<1x128xf32> to vector<8x128xf32>
    %12 = arith.addf %10, %11 : vector<8x128xf32>
    %cst_10 = arith.constant 0.000000e+00 : f32
    %13 = vector.broadcast %cst_10 : f32 to vector<8x128xf32>
    %14 = arith.maximumf %12, %13 : vector<8x128xf32>
    %c0_11 = arith.constant 0 : index
    %c0_12 = arith.constant 0 : index
    %15 = vector.load %arg5[%c0_11, %c0_12] : memref<128x256xf32, #tpu.memory_space<vmem>>, vector<128x256xf32>
    %cst_13 = arith.constant dense<0.000000e+00> : vector<8x256xf32>
    %16 = tpu.matmul %14, %15, %cst_13 {dimension_numbers = #tpu.dot_dimension_numbers<[1], [0], [0], [1], [0, 0, 1, 1], [], []>} : vector<8x128xf32>, vector<128x256xf32>, vector<8x256xf32> -> vector<8x256xf32>
    %c0_14 = arith.constant 0 : index
    %c0_15 = arith.constant 0 : index
    %17 = vector.load %arg6[%c0_14, %c0_15] : memref<1x256xf32, #tpu.memory_space<vmem>>, vector<1x256xf32>
    %18 = vector.broadcast %17 : vector<1x256xf32> to vector<8x256xf32>
    %19 = arith.addf %16, %18 : vector<8x256xf32>
    %20 = vector.extract_strided_slice %19 {offsets = [0, 0], sizes = [8, 128], strides = [1, 1]} : vector<8x256xf32> to vector<8x128xf32>
    %21 = vector.extract_strided_slice %19 {offsets = [0, 128], sizes = [8, 128], strides = [1, 1]} : vector<8x256xf32> to vector<8x128xf32>
    %cst_16 = arith.constant 5.000000e-01 : f32
    %22 = vector.broadcast %cst_16 : f32 to vector<8x128xf32>
    %23 = arith.mulf %22, %21 : vector<8x128xf32>
    %24 = math.exp %23 : vector<8x128xf32>
    %c0_17 = arith.constant 0 : index
    %c0_18 = arith.constant 0 : index
    %25 = vector.load %arg7[%c0_17, %c0_18] : memref<8x128xf32, #tpu.memory_space<vmem>>, vector<8x128xf32>
    %26 = arith.mulf %24, %25 : vector<8x128xf32>
    %27 = arith.addf %20, %26 : vector<8x128xf32>
    %c0_19 = arith.constant 0 : index
    %c0_20 = arith.constant 0 : index
    %28 = vector.load %arg8[%c0_19, %c0_20] : memref<8x384xf32, #tpu.memory_space<vmem>>, vector<8x256xf32>
    tpu.vector_store %arg8[%c0_19, %c0_20], %19 {strides = array<i32>} : memref<8x384xf32, #tpu.memory_space<vmem>>, vector<8x256xf32>,
    %c0_21 = arith.constant 0 : index
    %c256 = arith.constant 256 : index
    %29 = vector.load %arg8[%c0_21, %c256] : memref<8x384xf32, #tpu.memory_space<vmem>>, vector<8x128xf32>
    tpu.vector_store %arg8[%c0_21, %c256], %27 {strides = array<i32>} : memref<8x384xf32, #tpu.memory_space<vmem>>, vector<8x128xf32>,
    return
  }
  func.func @transform_0(%arg0: i32) -> (i32, i32) {
    %c0_i32 = arith.constant 0 : i32
    %c0_i32_0 = arith.constant 0 : i32
    return %arg0, %c0_i32 : i32, i32
  }
  func.func @transform_1(%arg0: i32) -> (i32, i32) {
    %c0_i32 = arith.constant 0 : i32
    %c0_i32_0 = arith.constant 0 : i32
    %c0_i32_1 = arith.constant 0 : i32
    return %c0_i32, %c0_i32_0 : i32, i32
  }
  func.func @transform_2(%arg0: i32) -> (i32, i32) {
    %c0_i32 = arith.constant 0 : i32
    %c0_i32_0 = arith.constant 0 : i32
    %c0_i32_1 = arith.constant 0 : i32
    return %c0_i32, %c0_i32_0 : i32, i32
  }
  func.func @transform_3(%arg0: i32) -> (i32, i32) {
    %c0_i32 = arith.constant 0 : i32
    %c0_i32_0 = arith.constant 0 : i32
    %c0_i32_1 = arith.constant 0 : i32
    return %c0_i32, %c0_i32_0 : i32, i32
  }
  func.func @transform_4(%arg0: i32) -> (i32, i32) {
    %c0_i32 = arith.constant 0 : i32
    %c0_i32_0 = arith.constant 0 : i32
    %c0_i32_1 = arith.constant 0 : i32
    return %c0_i32, %c0_i32_0 : i32, i32
  }
  func.func @transform_5(%arg0: i32) -> (i32, i32) {
    %c0_i32 = arith.constant 0 : i32
    %c0_i32_0 = arith.constant 0 : i32
    %c0_i32_1 = arith.constant 0 : i32
    return %c0_i32, %c0_i32_0 : i32, i32
  }
  func.func @transform_6(%arg0: i32) -> (i32, i32) {
    %c0_i32 = arith.constant 0 : i32
    %c0_i32_0 = arith.constant 0 : i32
    return %arg0, %c0_i32 : i32, i32
  }
  func.func @transform_7(%arg0: i32) -> (i32, i32) {
    %c0_i32 = arith.constant 0 : i32
    %c0_i32_0 = arith.constant 0 : i32
    return %arg0, %c0_i32 : i32, i32
  }
}

</mosaic_0001>

<llo_original>
// kernel: tpu_custom_call.1
$region0: #{tpu_custom_call.1}
  #allocation0 [shape = 'u32[]', space=smem, size = 0x4, offset = 0x4, fixed_abs, tag = 'smem constant byte address 0x4 - core index']
  #allocation1 [shape = 'u32[144,128]{1,0:T(1,128)}', space=vmem, size = 0x12000, scoped, tag = 'internal scratch']
  %s0 = inlined_call_operand.hbm [shape: f32[8,32], index: 0, kind: input, shape index: {}]
  %s1 = inlined_call_operand.hbm [shape: f32[32,128], index: 1, kind: input, shape index: {}]
  %s2 = inlined_call_operand.hbm [shape: f32[128,128], index: 2, kind: input, shape index: {}]
  %s3 = inlined_call_operand.vmem [shape: f32[2,128], index: 3, kind: input, shape index: {}]
  %s4 = inlined_call_operand.hbm [shape: f32[128,256], index: 4, kind: input, shape index: {}]
  %s5 = inlined_call_operand.vmem [shape: f32[1,256], index: 5, kind: input, shape index: {}]
  %s6 = inlined_call_operand.vmem [shape: f32[8,128], index: 6, kind: input, shape index: {}]
  %s7 = inlined_call_operand.hbm [shape: f32[8,384], index: 7, kind: output, shape index: {}]
  %s8 = sld [smem:[#allocation0]]
  $region54: #{tpu_custom_call.1} parent=0
    _
  %s10 = ssub.s32 1, %s8
  %s11 = scalar_select 0, %s10, %s8
  $region1: #{tpu_custom_call.1} parent=0
    #allocation2 [shape = 'u8[4096]{0}', space=vmem, size = 0x1000, scoped, tag = 'input window, operand 0, single buffered']
    #allocation3 [shape = 's32[1]{0}', space=sflag, size = 0x4, scoped, tag = 'scoped memory for tpu_custom_call.1']
    #allocation4 [shape = 's32[1]{0}', space=sflag, size = 0x4, scoped, tag = 'scoped memory for tpu_custom_call.1']
    #allocation5 [shape = 'u8[16384]{0}', space=vmem, size = 0x4000, scoped, tag = 'input window, operand 1, single buffered']
    #allocation6 [shape = 's32[1]{0}', space=sflag, size = 0x4, scoped, tag = 'scoped memory for tpu_custom_call.1']
    #allocation7 [shape = 'u8[65536]{0}', space=vmem, size = 0x10000, scoped, tag = 'input window, operand 2, single buffered']
    #allocation8 [shape = 'u8[131072]{0}', space=vmem, size = 0x20000, scoped, tag = 'input window, operand 4, single buffered']
    #allocation9 [shape = 's32[1]{0}', space=sflag, size = 0x4, scoped, tag = 'scoped memory for tpu_custom_call.1']
    #allocation10 [shape = 'u8[12288]{0}', space=vmem, size = 0x3000, scoped, tag = 'output window, operand 0, single buffered']
    %12 = vsyncpa [#allocation3], 0
    %13 = vsyncpa [#allocation6], 0
    %14 = vsyncpa [#allocation9], 0
    %15 = vsyncpa [#allocation4], 0
    // Predicated region
    $region2: #{tpu_custom_call.1} parent=1 // pred_check
      _
    $region3: #{tpu_custom_call.1} parent=1 // pred_check_branch
      %17 = sbr.rel (0) target = $region5
    $region4: #{tpu_custom_call.1} parent=1 // pred_region
      %s19 = ssub.s32 128, 128
      %20 = vsyncadd [#allocation3], %s19
      %s22 = sshll.u32 [#allocation2], 4
      %s23 = int_to_ptr.vmem [resolvable:$true] %s22
      %25 = dma.hbm_to_vmem [thread:$0]  %s0, 128, %s23, [#allocation3]
    $region5: #{tpu_custom_call.1} parent=1 // pred_fallthru
      _
    // Predicated region
    $region6: #{tpu_custom_call.1} parent=1 // pred_check
      _
    $region7: #{tpu_custom_call.1} parent=1 // pred_check_branch
      %27 = sbr.rel (0) target = $region9
    $region8: #{tpu_custom_call.1} parent=1 // pred_region
      %s29 = ssub.s32 512, 512
      %30 = vsyncadd [#allocation6], %s29
      %s31 = sshll.u32 [#allocation5], 4
      %s32 = int_to_ptr.vmem [resolvable:$true] %s31
      %37 = dma.hbm_to_vmem [thread:$0]  %s1, 512, %s32, [#allocation6], 128, 128, 8
    $region9: #{tpu_custom_call.1} parent=1 // pred_fallthru
      _
    // Predicated region
    $region10: #{tpu_custom_call.1} parent=1 // pred_check
      _
    $region11: #{tpu_custom_call.1} parent=1 // pred_check_branch
      %39 = sbr.rel (0) target = $region13
    $region12: #{tpu_custom_call.1} parent=1 // pred_region
      %s41 = ssub.s32 2048, 2048
      %42 = vsyncadd [#allocation6], %s41
      %s43 = sshll.u32 [#allocation7], 4
      %s44 = int_to_ptr.vmem [resolvable:$true] %s43
      %49 = dma.hbm_to_vmem [thread:$0]  %s2, 2048, %s44, [#allocation6], 128, 128, 8
    $region13: #{tpu_custom_call.1} parent=1 // pred_fallthru
      _
    // Predicated region
    $region14: #{tpu_custom_call.1} parent=1 // pred_check
      _
    $region15: #{tpu_custom_call.1} parent=1 // pred_check_branch
      %51 = sbr.rel (0) target = $region17
    $region16: #{tpu_custom_call.1} parent=1 // pred_region
      _
    $region17: #{tpu_custom_call.1} parent=1 // pred_fallthru
      _
    // Predicated region
    $region18: #{tpu_custom_call.1} parent=1 // pred_check
      _
    $region19: #{tpu_custom_call.1} parent=1 // pred_check_branch
      %53 = sbr.rel (0) target = $region21
    $region20: #{tpu_custom_call.1} parent=1 // pred_region
      %s55 = ssub.s32 4096, 4096
      %56 = vsyncadd [#allocation9], %s55
      %s57 = sshll.u32 [#allocation8], 4
      %s58 = int_to_ptr.vmem [resolvable:$true] %s57
      %63 = dma.hbm_to_vmem [thread:$0]  %s4, 4096, %s58, [#allocation9], 256, 256, 16
    $region21: #{tpu_custom_call.1} parent=1 // pred_fallthru
      _
    // Predicated region
    $region22: #{tpu_custom_call.1} parent=1 // pred_check
      _
    $region23: #{tpu_custom_call.1} parent=1 // pred_check_branch
      %65 = sbr.rel (0) target = $region25
    $region24: #{tpu_custom_call.1} parent=1 // pred_region
      _
    $region25: #{tpu_custom_call.1} parent=1 // pred_fallthru
      _
    // Predicated region
    $region26: #{tpu_custom_call.1} parent=1 // pred_check
      _
    $region27: #{tpu_custom_call.1} parent=1 // pred_check_branch
      %67 = sbr.rel (0) target = $region29
    $region28: #{tpu_custom_call.1} parent=1 // pred_region
      _
    $region29: #{tpu_custom_call.1} parent=1 // pred_fallthru
      _
    // Predicated region
    $region30: #{tpu_custom_call.1} parent=1 // pred_check
      _
    $region31: #{tpu_custom_call.1} parent=1 // pred_check_branch
      %69 = sbr.rel (0) target = $region33
    $region32: #{tpu_custom_call.1} parent=1 // pred_region
      %70 = dma.done [#allocation3], 128
    $region33: #{tpu_custom_call.1} parent=1 // pred_fallthru
      _
    // Predicated region
    $region34: #{tpu_custom_call.1} parent=1 // pred_check
      _
    $region35: #{tpu_custom_call.1} parent=1 // pred_check_branch
      %72 = sbr.rel (0) target = $region37
    $region36: #{tpu_custom_call.1} parent=1 // pred_region
      %73 = dma.done [#allocation6], 512
    $region37: #{tpu_custom_call.1} parent=1 // pred_fallthru
      _
    // Predicated region
    $region38: #{tpu_custom_call.1} parent=1 // pred_check
      _
    $region39: #{tpu_custom_call.1} parent=1 // pred_check_branch
      %75 = sbr.rel (0) target = $region41
    $region40: #{tpu_custom_call.1} parent=1 // pred_region
      %76 = dma.done [#allocation6], 2048
    $region41: #{tpu_custom_call.1} parent=1 // pred_fallthru
      _
    // Predicated region
    $region42: #{tpu_custom_call.1} parent=1 // pred_check
      _
    $region43: #{tpu_custom_call.1} parent=1 // pred_check_branch
      %78 = sbr.rel (0) target = $region45
    $region44: #{tpu_custom_call.1} parent=1 // pred_region
      %79 = dma.done [#allocation9], 4096
    $region45: #{tpu_custom_call.1} parent=1 // pred_fallthru
      _
    %v80 = vld [vmem:[#allocation2] sm:$0xff]
    %v81 = vld [vmem:[#allocation5] sm:$0xff]
    %v82 = vld [vmem:[#allocation5 + $0x8] sm:$0xff]
    %v83 = vld [vmem:[#allocation5 + $0x10] sm:$0xff]
    %v84 = vld [vmem:[#allocation5 + $0x18] sm:$0xff]
    %v85 = vld [vmem:[%s3] sm:$0x1]
    %v86 = vlaneseq
    %v87 = vshrl.u32 %v86, 7
    %v88 = vsub.s32 0, %v87
    %v89 = vrot.slane %v85, %v88
    %vm90 = vcmask 261120
    %v92 = vsel %vm90, %v80, 0
    %94 = vmatprep.subr.mxu0 0.0
    %95 = vmatpush1.msra.mxu0 %v81
    %96 = vmatprep.subr.mxu0 0.0
    %97 = vmatpush1.msra.mxu0 %v82
    %98 = vmatprep.subr.mxu0 0.0
    %99 = vmatpush1.msra.mxu0 %v83
    %100 = vmatprep.subr.mxu0 0.0
    %101 = vmatpush1.msra.mxu0 %v84
    %102 = vmatprep.subr.mxu0 0.0
    %103 = vmatpush1.msra.mxu0 0.0
    %104 = vmatprep.subr.mxu0 0.0
    %105 = vmatpush1.msra.mxu0 0.0
    %106 = vmatprep.subr.mxu0 0.0
    %107 = vmatpush1.msra.mxu0 0.0
    %108 = vmatprep.subr.mxu0 0.0
    %109 = vmatpush1.msra.mxu0 0.0
    %110 = vmatprep.subr.mxu0 0.0
    %111 = vmatpush1.msra.mxu0 0.0
    %112 = vmatprep.subr.mxu0 0.0
    %113 = vmatpush1.msra.mxu0 0.0
    %114 = vmatprep.subr.mxu0 0.0
    %115 = vmatpush1.msra.mxu0 0.0
    %116 = vmatprep.subr.mxu0 0.0
    %117 = vmatpush1.msra.mxu0 0.0
    %118 = vmatprep.subr.mxu0 0.0
    %119 = vmatpush1.msra.mxu0 0.0
    %120 = vmatprep.subr.mxu0 0.0
    %121 = vmatpush1.msra.mxu0 0.0
    %122 = vmatprep.subr.mxu0 0.0
    %123 = vmatpush1.msra.mxu0 0.0
    %124 = vmatprep.subr.mxu0 0.0
    %125 = vmatpush1.msra.mxu0 0.0
    %126 = vmatprep.subr.mxu0 0.0
    %127 = vmatpush1.msra.mxu0 0.0
    %128 = vmatprep.subr.mxu0 0.0
    %129 = vmatpush1.msra.mxu0 0.0
    %130 = vmatprep.subr.mxu0 0.0
    %131 = vmatpush1.msra.mxu0 0.0
    %132 = vmatprep.subr.mxu0 0.0
    %133 = vmatpush1.msra.mxu0 0.0
    %134 = vmatprep.subr.mxu0 0.0
    %135 = vmatpush1.msra.mxu0 0.0
    %136 = vmatprep.subr.mxu0 0.0
    %137 = vmatpush1.msra.mxu0 0.0
    %138 = vmatprep.subr.mxu0 0.0
    %139 = vmatpush1.msra.mxu0 0.0
    %140 = vmatprep.subr.mxu0 0.0
    %141 = vmatpush1.msra.mxu0 0.0
    %142 = vmatprep.subr.mxu0 0.0
    %143 = vmatpush1.msra.mxu0 0.0
    %144 = vmatprep.subr.mxu0 0.0
    %145 = vmatpush1.msra.mxu0 0.0
    %146 = vmatprep.subr.mxu0 0.0
    %147 = vmatpush1.msra.mxu0 0.0
    %148 = vmatprep.subr.mxu0 0.0
    %149 = vmatpush1.msra.mxu0 0.0
    %150 = vmatprep.subr.mxu0 0.0
    %151 = vmatpush1.msra.mxu0 0.0
    %152 = vmatprep.subr.mxu0 0.0
    %153 = vmatpush1.msra.mxu0 0.0
    %154 = vmatprep.subr.mxu0 0.0
    %155 = vmatpush1.msra.mxu0 0.0
    %156 = vmatprep.subr.mxu0 0.0
    %157 = vmatpush1.msra.mxu0 0.0
    %158 = vmatprep.mubr.f32.mxu0 0.0
    %159 = vmatmul.mubr.f32.gmra.mrb[0].mxu0 %v92
    %v160 = vpop.f32.mrb[0].mxu0
    %v161 = vadd.f32 %v89, %v160
    %v162 = vpop.f32.mrb[0].mxu0
    %163 = vdwg.mxu0
    %v164 = vmax.f32 %v161, 0.0
    %v165 = vld [vmem:[#allocation7] sm:$0xff]
    %v166 = vld [vmem:[#allocation7 + $0x8] sm:$0xff]
    %v167 = vld [vmem:[#allocation7 + $0x10] sm:$0xff]
    %v168 = vld [vmem:[#allocation7 + $0x18] sm:$0xff]
    %v169 = vld [vmem:[#allocation7 + $0x20] sm:$0xff]
    %v170 = vld [vmem:[#allocation7 + $0x28] sm:$0xff]
    %v171 = vld [vmem:[#allocation7 + $0x30] sm:$0xff]
    %v172 = vld [vmem:[#allocation7 + $0x38] sm:$0xff]
    %v173 = vld [vmem:[#allocation7 + $0x40] sm:$0xff]
    %v174 = vld [vmem:[#allocation7 + $0x48] sm:$0xff]
    %v175 = vld [vmem:[#allocation7 + $0x50] sm:$0xff]
    %v176 = vld [vmem:[#allocation7 + $0x58] sm:$0xff]
    %v177 = vld [vmem:[#allocation7 + $0x60] sm:$0xff]
    %v178 = vld [vmem:[#allocation7 + $0x68] sm:$0xff]
    %v179 = vld [vmem:[#allocation7 + $0x70] sm:$0xff]
    %v180 = vld [vmem:[#allocation7 + $0x78] sm:$0xff]
    %v181 = vld [vmem:[%s3 + $0x1] sm:$0x1]
    %v182 = vlaneseq
    %v183 = vshrl.u32 %v182, 7
    %v184 = vsub.s32 0, %v183
    %v185 = vrot.slane %v181, %v184
    %186 = vmatprep.subr.mxu0 0.0
    %187 = vmatpush1.msra.mxu0 %v165
    %188 = vmatprep.subr.mxu0 0.0
    %189 = vmatpush1.msra.mxu0 %v166
    %190 = vmatprep.subr.mxu0 0.0
    %191 = vmatpush1.msra.mxu0 %v167
    %192 = vmatprep.subr.mxu0 0.0
    %193 = vmatpush1.msra.mxu0 %v168
    %194 = vmatprep.subr.mxu0 0.0
    %195 = vmatpush1.msra.mxu0 %v169
    %196 = vmatprep.subr.mxu0 0.0
    %197 = vmatpush1.msra.mxu0 %v170
    %198 = vmatprep.subr.mxu0 0.0
    %199 = vmatpush1.msra.mxu0 %v171
    %200 = vmatprep.subr.mxu0 0.0
    %201 = vmatpush1.msra.mxu0 %v172
    %202 = vmatprep.subr.mxu0 0.0
    %203 = vmatpush1.msra.mxu0 %v173
    %204 = vmatprep.subr.mxu0 0.0
    %205 = vmatpush1.msra.mxu0 %v174
    %206 = vmatprep.subr.mxu0 0.0
    %207 = vmatpush1.msra.mxu0 %v175
    %208 = vmatprep.subr.mxu0 0.0
    %209 = vmatpush1.msra.mxu0 %v176
    %210 = vmatprep.subr.mxu0 0.0
    %211 = vmatpush1.msra.mxu0 %v177
    %212 = vmatprep.subr.mxu0 0.0
    %213 = vmatpush1.msra.mxu0 %v178
    %214 = vmatprep.subr.mxu0 0.0
    %215 = vmatpush1.msra.mxu0 %v179
    %216 = vmatprep.subr.mxu0 0.0
    %217 = vmatpush1.msra.mxu0 %v180
    %218 = vmatprep.subr.mxu0 0.0
    %219 = vmatpush1.msra.mxu0 0.0
    %220 = vmatprep.subr.mxu0 0.0
    %221 = vmatpush1.msra.mxu0 0.0
    %222 = vmatprep.subr.mxu0 0.0
    %223 = vmatpush1.msra.mxu0 0.0
    %224 = vmatprep.subr.mxu0 0.0
    %225 = vmatpush1.msra.mxu0 0.0
    %226 = vmatprep.subr.mxu0 0.0
    %227 = vmatpush1.msra.mxu0 0.0
    %228 = vmatprep.subr.mxu0 0.0
    %229 = vmatpush1.msra.mxu0 0.0
    %230 = vmatprep.subr.mxu0 0.0
    %231 = vmatpush1.msra.mxu0 0.0
    %232 = vmatprep.subr.mxu0 0.0
    %233 = vmatpush1.msra.mxu0 0.0
    %234 = vmatprep.subr.mxu0 0.0
    %235 = vmatpush1.msra.mxu0 0.0
    %236 = vmatprep.subr.mxu0 0.0
    %237 = vmatpush1.msra.mxu0 0.0
    %238 = vmatprep.subr.mxu0 0.0
    %239 = vmatpush1.msra.mxu0 0.0
    %240 = vmatprep.subr.mxu0 0.0
    %241 = vmatpush1.msra.mxu0 0.0
    %242 = vmatprep.subr.mxu0 0.0
    %243 = vmatpush1.msra.mxu0 0.0
    %244 = vmatprep.subr.mxu0 0.0
    %245 = vmatpush1.msra.mxu0 0.0
    %246 = vmatprep.subr.mxu0 0.0
    %247 = vmatpush1.msra.mxu0 0.0
    %248 = vmatprep.subr.mxu0 0.0
    %249 = vmatpush1.msra.mxu0 0.0
    %250 = vmatprep.mubr.f32.mxu0 0.0
    %251 = vmatmul.mubr.f32.gmra.mrb[0].mxu0 %v164
    %v252 = vpop.f32.mrb[0].mxu0
    %v253 = vadd.f32 %v185, %v252
    %v254 = vpop.f32.mrb[0].mxu0
    %255 = vdwg.mxu0
    %v256 = vmax.f32 %v253, 0.0
    %v257 = vld [vmem:[#allocation8] sm:$0xff]
    %v258 = vld [vmem:[#allocation8 + $0x8] sm:$0xff]
    %v259 = vld [vmem:[#allocation8 + $0x10] sm:$0xff]
    %v260 = vld [vmem:[#allocation8 + $0x18] sm:$0xff]
    %v261 = vld [vmem:[#allocation8 + $0x20] sm:$0xff]
    %v262 = vld [vmem:[#allocation8 + $0x28] sm:$0xff]
    %v263 = vld [vmem:[#allocation8 + $0x30] sm:$0xff]
    %v264 = vld [vmem:[#allocation8 + $0x38] sm:$0xff]
    %v265 = vld [vmem:[#allocation8 + $0x40] sm:$0xff]
    %v266 = vld [vmem:[#allocation8 + $0x48] sm:$0xff]
    %v267 = vld [vmem:[#allocation8 + $0x50] sm:$0xff]
    %v268 = vld [vmem:[#allocation8 + $0x58] sm:$0xff]
    %v269 = vld [vmem:[#allocation8 + $0x60] sm:$0xff]
    %v270 = vld [vmem:[#allocation8 + $0x68] sm:$0xff]
    %v271 = vld [vmem:[#allocation8 + $0x70] sm:$0xff]
    %v272 = vld [vmem:[#allocation8 + $0x78] sm:$0xff]
    %v273 = vld [vmem:[#allocation8 + $0x80] sm:$0xff]
    %v274 = vld [vmem:[#allocation8 + $0x88] sm:$0xff]
    %v275 = vld [vmem:[#allocation8 + $0x90] sm:$0xff]
    %v276 = vld [vmem:[#allocation8 + $0x98] sm:$0xff]
    %v277 = vld [vmem:[#allocation8 + $0xa0] sm:$0xff]
    %v278 = vld [vmem:[#allocation8 + $0xa8] sm:$0xff]
    %v279 = vld [vmem:[#allocation8 + $0xb0] sm:$0xff]
    %v280 = vld [vmem:[#allocation8 + $0xb8] sm:$0xff]
    %v281 = vld [vmem:[#allocation8 + $0xc0] sm:$0xff]
    %v282 = vld [vmem:[#allocation8 + $0xc8] sm:$0xff]
    %v283 = vld [vmem:[#allocation8 + $0xd0] sm:$0xff]
    %v284 = vld [vmem:[#allocation8 + $0xd8] sm:$0xff]
    %v285 = vld [vmem:[#allocation8 + $0xe0] sm:$0xff]
    %v286 = vld [vmem:[#allocation8 + $0xe8] sm:$0xff]
    %v287 = vld [vmem:[#allocation8 + $0xf0] sm:$0xff]
    %v288 = vld [vmem:[#allocation8 + $0xf8] sm:$0xff]
    %v289 = vld [vmem:[%s5] sm:$0x3]
    %v291 = vlaneseq
    %v292 = vshrl.u32 %v291, 7
    %v293 = vsub.s32 0, %v292
    %v294 = vrot.slane %v289, %v293
    %v295 = vlaneseq
    %v296 = vshrl.u32 %v295, 7
    %v297 = vsub.s32 1, %v296
    %v298 = vrot.slane %v289, %v297
    %301 = vmatprep.subr.mxu0 %v258
    %302 = vmatpush1.msra.mxu0 %v257
    %303 = vmatprep.subr.mxu0 %v260
    %304 = vmatpush1.msra.mxu0 %v259
    %305 = vmatprep.subr.mxu0 %v262
    %306 = vmatpush1.msra.mxu0 %v261
    %307 = vmatprep.subr.mxu0 %v264
    %308 = vmatpush1.msra.mxu0 %v263
    %309 = vmatprep.subr.mxu0 %v266
    %310 = vmatpush1.msra.mxu0 %v265
    %311 = vmatprep.subr.mxu0 %v268
    %312 = vmatpush1.msra.mxu0 %v267
    %313 = vmatprep.subr.mxu0 %v270
    %314 = vmatpush1.msra.mxu0 %v269
    %315 = vmatprep.subr.mxu0 %v272
    %316 = vmatpush1.msra.mxu0 %v271
    %317 = vmatprep.subr.mxu0 %v274
    %318 = vmatpush1.msra.mxu0 %v273
    %319 = vmatprep.subr.mxu0 %v276
    %320 = vmatpush1.msra.mxu0 %v275
    %321 = vmatprep.subr.mxu0 %v278
    %322 = vmatpush1.msra.mxu0 %v277
    %323 = vmatprep.subr.mxu0 %v280
    %324 = vmatpush1.msra.mxu0 %v279
    %325 = vmatprep.subr.mxu0 %v282
    %326 = vmatpush1.msra.mxu0 %v281
    %327 = vmatprep.subr.mxu0 %v284
    %328 = vmatpush1.msra.mxu0 %v283
    %329 = vmatprep.subr.mxu0 %v286
    %330 = vmatpush1.msra.mxu0 %v285
    %331 = vmatprep.subr.mxu0 %v288
    %332 = vmatpush1.msra.mxu0 %v287
    %333 = vmatprep.subr.mxu0 0.0
    %334 = vmatpush1.msra.mxu0 0.0
    %335 = vmatprep.subr.mxu0 0.0
    %336 = vmatpush1.msra.mxu0 0.0
    %337 = vmatprep.subr.mxu0 0.0
    %338 = vmatpush1.msra.mxu0 0.0
    %339 = vmatprep.subr.mxu0 0.0
    %340 = vmatpush1.msra.mxu0 0.0
    %341 = vmatprep.subr.mxu0 0.0
    %342 = vmatpush1.msra.mxu0 0.0
    %343 = vmatprep.subr.mxu0 0.0
    %344 = vmatpush1.msra.mxu0 0.0
    %345 = vmatprep.subr.mxu0 0.0
    %346 = vmatpush1.msra.mxu0 0.0
    %347 = vmatprep.subr.mxu0 0.0
    %348 = vmatpush1.msra.mxu0 0.0
    %349 = vmatprep.subr.mxu0 0.0
    %350 = vmatpush1.msra.mxu0 0.0
    %351 = vmatprep.subr.mxu0 0.0
    %352 = vmatpush1.msra.mxu0 0.0
    %353 = vmatprep.subr.mxu0 0.0
    %354 = vmatpush1.msra.mxu0 0.0
    %355 = vmatprep.subr.mxu0 0.0
    %356 = vmatpush1.msra.mxu0 0.0
    %357 = vmatprep.subr.mxu0 0.0
    %358 = vmatpush1.msra.mxu0 0.0
    %359 = vmatprep.subr.mxu0 0.0
    %360 = vmatpush1.msra.mxu0 0.0
    %361 = vmatprep.subr.mxu0 0.0
    %362 = vmatpush1.msra.mxu0 0.0
    %363 = vmatprep.subr.mxu0 0.0
    %364 = vmatpush1.msra.mxu0 0.0
    %365 = vmatprep.mubr.f32.mxu0 0.0
    %366 = vmatmul.mubr.f32.gmra.mrb[0].mxu0 %v256
    %v367 = vpop.f32.mrb[0].mxu0
    %v368 = vadd.f32 %v294, %v367
    %v369 = vpop.f32.mrb[0].mxu0
    %v370 = vadd.f32 %v298, %v369
    %371 = vdwg.mxu0
    %v372 = vmul.f32 %v370, 0.5
    %v373 = vmul.f32 %v372, 1.442695
    %v374 = vpow.pop %v373
    %v375 = vld [vmem:[%s6] sm:$0xff]
    %v376 = vmul.f32 %v374, %v375
    %v377 = vadd.f32 %v368, %v376
    %378 = vst [vmem:[#allocation10] sm:$0xff] %v368
    %379 = vst [vmem:[#allocation10 + $0x8] sm:$0xff] %v370
    %380 = vst [vmem:[#allocation10 + $0x10] sm:$0xff] %v377
    // Predicated region
    $region46: #{tpu_custom_call.1} parent=1 // pred_check
      _
    $region47: #{tpu_custom_call.1} parent=1 // pred_check_branch
      %382 = sbr.rel (0) target = $region49
    $region48: #{tpu_custom_call.1} parent=1 // pred_region
      %s384 = ssub.s32 384, 384
      %385 = vsyncadd [#allocation4], %s384
      %s387 = sshll.u32 [#allocation10], 4
      %s388 = int_to_ptr.vmem [resolvable:$true] %s387
      %390 = dma.vmem_to_hbm [thread:$0]  %s388, 384, %s7, [#allocation4]
    $region49: #{tpu_custom_call.1} parent=1 // pred_fallthru
      _
    // Predicated region
    $region50: #{tpu_custom_call.1} parent=1 // pred_check
      _
    $region51: #{tpu_custom_call.1} parent=1 // pred_check_branch
      %392 = sbr.rel (0) target = $region53
    $region52: #{tpu_custom_call.1} parent=1 // pred_region
      %393 = dma.done [#allocation4], 384
    $region53: #{tpu_custom_call.1} parent=1 // pred_fallthru
      _
    %394 = vsyncpa [#allocation3], 1
    %395 = vsyncpa [#allocation6], 1
    %396 = vsyncpa [#allocation9], 1
    %397 = vsyncpa [#allocation4], 1

</llo_original>
